<compile_context>
chip_gen: v7x
topology: tpu7x:2x2x1
jax: 0.10.0
libtpu: 0.0.40
codegen_flags: <defaults>
</compile_context>

<pallas_src>
import functools

import jax
import jax.numpy as jnp
from jax.experimental import pallas as pl
from jax.experimental.pallas import tpu as pltpu


def _round_up(x, m):
    return ((x + m - 1) // m) * m


def _patch_embed_kernel(p_ref, add_ref, w_ref, o_ref):
    # p_ref:   (TB, S_pad, K_pad)  batch tile of per-sequence-row flattened
    #                              patches; row s=0 is the zero "cls slot".
    # add_ref: (S_pad, E_pad) f32  cls/pos_embed/bias add table (grid-invariant).
    # w_ref:   (K_pad, E_pad)      projection weight (grid-invariant, resident).
    # o_ref:   (TB, S_pad, E_pad)  f32 output tile -> full lane-dense stores.
    tb, s, k = p_ref.shape
    e = w_ref.shape[-1]
    # Fold (batch tile, seq) into the MXU M dimension.  S_pad is a multiple of
    # the sublane pack (8 / 16), so this reshape is layout-preserving (free).
    lhs = p_ref[...].reshape(tb * s, k)
    proj = jnp.dot(lhs, w_ref[...], preferred_element_type=jnp.float32)
    out = proj.reshape(tb, s, e) + add_ref[...][None, :, :]
    o_ref[...] = out.astype(o_ref.dtype)


@functools.partial(
    jax.jit,
    static_argnames=("patch_size", "compute_dtype", "allow_input_fusion"))
def patch_embedding(x, w_conv, b_conv, cls_token, pos_embed, *, patch_size,
                    compute_dtype=jnp.bfloat16, allow_input_fusion=True):
    """
    x:          (B, C, H, W)  float32, NCHW (PyTorch layout)
    w_conv:     (E, C, P, P)  Conv2d weight
    b_conv:     (E,)          Conv2d bias
    cls_token:  (1, 1, E)
    pos_embed:  (1, 1+N, E)
    returns:    (B, 1+N, E)   float32
    """
    B, C, H, W = x.shape
    P = patch_size
    E = w_conv.shape[0]
    nH, nW = H // P, W // P
    N = nH * nW
    K = C * P * P
    S = 1 + N                       # cls + patches

    # --- padded geometry (lane-dense last dims, sublane-aligned seq dim) ----
    row_align = 16 if jnp.dtype(compute_dtype).itemsize < 4 else 8
    S_pad = _round_up(S, row_align)
    K_pad = _round_up(K, 128)
    E_pad = _round_up(E, 128)

    # --- batch tile: fixed MXU row budget, >=2 grid steps when B allows -----
    target_rows = 512
    TB = max(1, min(B, target_rows // S_pad))
    while TB > 1 and _round_up(B, TB) // TB < 2:   # v7x: 2 TensorCores
        TB -= 1
    B_pad = _round_up(B, TB)
    grid = (B_pad // TB,)

    # --- patch extraction (im2col); row 0 of the seq axis is the cls slot ---
    # (c, kh, kw) flatten order matches the Conv2d weight flatten below.
    xp = x.reshape(B, C, nH, P, nW, P)
    xp = jnp.transpose(xp, (0, 2, 4, 1, 3, 5)).reshape(B, N, K)
    patches = jnp.pad(xp.astype(compute_dtype),
                      ((0, B_pad - B), (1, S_pad - 1 - N), (0, K_pad - K)))

    # Conv2d weight (E, C, P, P) -> (K, E) so that patch @ W == conv output.
    w_mat = jnp.transpose(w_conv.reshape(E, K)).astype(compute_dtype)
    w_mat = jnp.pad(w_mat, ((0, K_pad - K), (0, E_pad - E)))

    # Per-sequence-row add table (f32, kept exact):
    #   row 0      -> cls_token + pos_embed[0]     (patch row is all zeros)
    #   rows 1..N  -> conv bias + pos_embed[1..N]
    pos = pos_embed.reshape(S, E).astype(jnp.float32)
    add_tab = jnp.concatenate(
        [cls_token.reshape(1, E).astype(jnp.float32) + pos[:1],
         pos[1:] + b_conv.reshape(1, E).astype(jnp.float32)], axis=0)
    add_tab = jnp.pad(add_tab, ((0, S_pad - S), (0, E_pad - E)))

    compiler_params = pltpu.CompilerParams(
        dimension_semantics=("parallel",),   # batch-tile axis shards across TCs
        allow_input_fusion=([True, False, False] if allow_input_fusion else None),
    )

    out = pl.pallas_call(
        _patch_embed_kernel,
        out_shape=jax.ShapeDtypeStruct((B_pad, S_pad, E_pad), jnp.float32),
        grid=grid,
        in_specs=[
            pl.BlockSpec((TB, S_pad, K_pad), lambda i: (i, 0, 0)),  # patches
            pl.BlockSpec((S_pad, E_pad), lambda i: (0, 0)),         # add table
            pl.BlockSpec((K_pad, E_pad), lambda i: (0, 0)),         # weight
        ],
        out_specs=pl.BlockSpec((TB, S_pad, E_pad), lambda i: (i, 0, 0)),
        compiler_params=compiler_params,
    )(patches, add_tab, w_mat)

    # Identity slice (elided by XLA) whenever B, S, E are already aligned.
    return out[:B, :S, :E]


def _reference(x, w_conv, b_conv, cls_token, pos_embed, *, patch_size):
    """Pure-JAX reference using conv_general_dilated (matches PyTorch Conv2d)."""
    B = x.shape[0]
    E = w_conv.shape[0]
    y = jax.lax.conv_general_dilated(
        x, w_conv, window_strides=(patch_size, patch_size), padding="VALID",
        dimension_numbers=("NCHW", "OIHW", "NCHW"))
    y = y + b_conv.reshape(1, E, 1, 1)
    y = y.reshape(B, E, -1)            # flatten(2)
    y = jnp.transpose(y, (0, 2, 1))    # transpose(1, 2)
    cls = jnp.broadcast_to(cls_token, (B, 1, E))
    y = jnp.concatenate([cls, y], axis=1)
    return y + pos_embed


if __name__ == "__main__":
    # Small shapes consistent with the module:
    #   img_size=16, patch_size=8, in_ch=3, embed_dim=32  ->  num_patches = 4
    B, C, IMG, P, E = 2, 3, 16, 8, 32
    N = (IMG // P) ** 2

    key = jax.random.PRNGKey(0)
    kx, kw, kb, kc, kp = jax.random.split(key, 5)

    x = jax.random.normal(kx, (B, C, IMG, IMG), dtype=jnp.float32)
    w_conv = jax.random.normal(kw, (E, C, P, P), dtype=jnp.float32) * 0.02
    b_conv = jax.random.normal(kb, (E,), dtype=jnp.float32) * 0.02
    cls_token = 0.02 * jax.random.truncated_normal(kc, -2.0, 2.0, (1, 1, E), jnp.float32)
    pos_embed = 0.02 * jax.random.truncated_normal(kp, -2.0, 2.0, (1, 1 + N, E), jnp.float32)

    ref = _reference(x, w_conv, b_conv, cls_token, pos_embed, patch_size=P)

    def run(**overrides):
        kwargs = dict(patch_size=P)
        kwargs.update(overrides)
        try:
            return jax.block_until_ready(
                patch_embedding(x, w_conv, b_conv, cls_token, pos_embed, **kwargs))
        except Exception:
            # allow_input_fusion is only an XLA-side hint; fall back if this
            # jax/libtpu build rejects it.  Correctness is unaffected.
            kwargs["allow_input_fusion"] = False
            return jax.block_until_ready(
                patch_embedding(x, w_conv, b_conv, cls_token, pos_embed, **kwargs))

    # Default bf16-input path (v6e/v7x MXU fast path, f32 accumulation + add).
    out_bf16 = run()
    assert out_bf16.shape == (B, 1 + N, E), out_bf16.shape
    assert jnp.allclose(out_bf16, ref, atol=5e-2, rtol=5e-2), \
        float(jnp.max(jnp.abs(out_bf16 - ref)))

    # f32 path: matches the PyTorch module numerics exactly.
    out_f32 = run(compute_dtype=jnp.float32)
    assert out_f32.shape == (B, 1 + N, E), out_f32.shape
    assert jnp.allclose(out_f32, ref, atol=1e-4, rtol=1e-4), \
        float(jnp.max(jnp.abs(out_f32 - ref)))

    print("KERNEL_OK")
</pallas_src>

<mosaic_0001>
module attributes {stable_mosaic.version = 11 : i64} {
  func.func @_patch_embed_kernel(%arg0: i32, %arg1: memref<1x16x256xbf16, #tpu.memory_space<vmem>>, %arg2: memref<16x128xf32, #tpu.memory_space<vmem>>, %arg3: memref<256x128xbf16, #tpu.memory_space<vmem>>, %arg4: memref<1x16x128xf32, #tpu.memory_space<vmem>>) attributes {dimension_semantics = [#tpu.dimension_semantics<parallel>], iteration_bounds = array<i64: 2>, scalar_prefetch = 0 : i64, scratch_operands = 0 : i64, tpu.core_type = #tpu.core_type<tc>, window_params = [{transform_indices = @transform_0, window_bounds = array<i64: 1, 16, 256>}, {pipeline_mode = #tpu.pipeline_mode<synchronous>, transform_indices = @transform_1, window_bounds = array<i64: 16, 128>}, {pipeline_mode = #tpu.pipeline_mode<synchronous>, transform_indices = @transform_2, window_bounds = array<i64: 256, 128>}, {transform_indices = @transform_3, window_bounds = array<i64: 1, 16, 128>}]} {
    %c0 = arith.constant 0 : index
    %c0_0 = arith.constant 0 : index
    %c0_1 = arith.constant 0 : index
    %0 = vector.load %arg1[%c0, %c0_0, %c0_1] : memref<1x16x256xbf16, #tpu.memory_space<vmem>>, vector<1x16x256xbf16>
    %1 = vector.shape_cast %0 : vector<1x16x256xbf16> to vector<16x256xbf16>
    %c0_2 = arith.constant 0 : index
    %c0_3 = arith.constant 0 : index
    %2 = vector.load %arg3[%c0_2, %c0_3] : memref<256x128xbf16, #tpu.memory_space<vmem>>, vector<256x128xbf16>
    %cst = arith.constant dense<0.000000e+00> : vector<16x128xf32>
    %3 = tpu.matmul %1, %2, %cst {dimension_numbers = #tpu.dot_dimension_numbers<[1], [0], [0], [1], [0, 0, 1, 1], [], []>} : vector<16x256xbf16>, vector<256x128xbf16>, vector<16x128xf32> -> vector<16x128xf32>
    %4 = vector.shape_cast %3 : vector<16x128xf32> to vector<1x16x128xf32>
    %c0_4 = arith.constant 0 : index
    %c0_5 = arith.constant 0 : index
    %5 = vector.load %arg2[%c0_4, %c0_5] : memref<16x128xf32, #tpu.memory_space<vmem>>, vector<16x128xf32>
    %6 = vector.shape_cast %5 : vector<16x128xf32> to vector<1x16x128xf32>
    %7 = arith.addf %4, %6 : vector<1x16x128xf32>
    %c0_6 = arith.constant 0 : index
    %c0_7 = arith.constant 0 : index
    %c0_8 = arith.constant 0 : index
    %8 = vector.load %arg4[%c0_6, %c0_7, %c0_8] : memref<1x16x128xf32, #tpu.memory_space<vmem>>, vector<1x16x128xf32>
    tpu.vector_store %arg4[%c0_6, %c0_7, %c0_8], %7 {strides = array<i32>} : memref<1x16x128xf32, #tpu.memory_space<vmem>>, vector<1x16x128xf32>,
    return
  }
  func.func @transform_0(%arg0: i32) -> (i32, i32, i32) {
    %c0_i32 = arith.constant 0 : i32
    %c0_i32_0 = arith.constant 0 : i32
    %c0_i32_1 = arith.constant 0 : i32
    return %arg0, %c0_i32, %c0_i32_0 : i32, i32, i32
  }
  func.func @transform_1(%arg0: i32) -> (i32, i32) {
    %c0_i32 = arith.constant 0 : i32
    %c0_i32_0 = arith.constant 0 : i32
    %c0_i32_1 = arith.constant 0 : i32
    return %c0_i32, %c0_i32_0 : i32, i32
  }
  func.func @transform_2(%arg0: i32) -> (i32, i32) {
    %c0_i32 = arith.constant 0 : i32
    %c0_i32_0 = arith.constant 0 : i32
    %c0_i32_1 = arith.constant 0 : i32
    return %c0_i32, %c0_i32_0 : i32, i32
  }
  func.func @transform_3(%arg0: i32) -> (i32, i32, i32) {
    %c0_i32 = arith.constant 0 : i32
    %c0_i32_0 = arith.constant 0 : i32
    %c0_i32_1 = arith.constant 0 : i32
    return %arg0, %c0_i32, %c0_i32_0 : i32, i32, i32
  }
}

module attributes {stable_mosaic.version = 11 : i64} {
  func.func @_patch_embed_kernel(%arg0: i32, %arg1: memref<1x16x256xbf16, #tpu.memory_space<vmem>>, %arg2: memref<16x128xf32, #tpu.memory_space<vmem>>, %arg3: memref<256x128xbf16, #tpu.memory_space<vmem>>, %arg4: memref<1x16x128xf32, #tpu.memory_space<vmem>>) attributes {dimension_semantics = [#tpu.dimension_semantics<parallel>], iteration_bounds = array<i64: 2>, scalar_prefetch = 0 : i64, scratch_operands = 0 : i64, tpu.core_type = #tpu.core_type<tc>, window_params = [{transform_indices = @transform_0, window_bounds = array<i64: 1, 16, 256>}, {pipeline_mode = #tpu.pipeline_mode<synchronous>, transform_indices = @transform_1, window_bounds = array<i64: 16, 128>}, {pipeline_mode = #tpu.pipeline_mode<synchronous>, transform_indices = @transform_2, window_bounds = array<i64: 256, 128>}, {transform_indices = @transform_3, window_bounds = array<i64: 1, 16, 128>}]} {
    %c0 = arith.constant 0 : index
    %c0_0 = arith.constant 0 : index
    %c0_1 = arith.constant 0 : index
    %0 = vector.load %arg1[%c0, %c0_0, %c0_1] : memref<1x16x256xbf16, #tpu.memory_space<vmem>>, vector<1x16x256xbf16>
    %1 = vector.shape_cast %0 : vector<1x16x256xbf16> to vector<16x256xbf16>
    %c0_2 = arith.constant 0 : index
    %c0_3 = arith.constant 0 : index
    %2 = vector.load %arg3[%c0_2, %c0_3] : memref<256x128xbf16, #tpu.memory_space<vmem>>, vector<256x128xbf16>
    %cst = arith.constant dense<0.000000e+00> : vector<16x128xf32>
    %3 = tpu.matmul %1, %2, %cst {dimension_numbers = #tpu.dot_dimension_numbers<[1], [0], [0], [1], [0, 0, 1, 1], [], []>} : vector<16x256xbf16>, vector<256x128xbf16>, vector<16x128xf32> -> vector<16x128xf32>
    %4 = vector.shape_cast %3 : vector<16x128xf32> to vector<1x16x128xf32>
    %c0_4 = arith.constant 0 : index
    %c0_5 = arith.constant 0 : index
    %5 = vector.load %arg2[%c0_4, %c0_5] : memref<16x128xf32, #tpu.memory_space<vmem>>, vector<16x128xf32>
    %6 = vector.shape_cast %5 : vector<16x128xf32> to vector<1x16x128xf32>
    %7 = arith.addf %4, %6 : vector<1x16x128xf32>
    %c0_6 = arith.constant 0 : index
    %c0_7 = arith.constant 0 : index
    %c0_8 = arith.constant 0 : index
    %8 = vector.load %arg4[%c0_6, %c0_7, %c0_8] : memref<1x16x128xf32, #tpu.memory_space<vmem>>, vector<1x16x128xf32>
    tpu.vector_store %arg4[%c0_6, %c0_7, %c0_8], %7 {strides = array<i32>} : memref<1x16x128xf32, #tpu.memory_space<vmem>>, vector<1x16x128xf32>,
    return
  }
  func.func @transform_0(%arg0: i32) -> (i32, i32, i32) {
    %c0_i32 = arith.constant 0 : i32
    %c0_i32_0 = arith.constant 0 : i32
    %c0_i32_1 = arith.constant 0 : i32
    return %arg0, %c0_i32, %c0_i32_0 : i32, i32, i32
  }
  func.func @transform_1(%arg0: i32) -> (i32, i32) {
    %c0_i32 = arith.constant 0 : i32
    %c0_i32_0 = arith.constant 0 : i32
    %c0_i32_1 = arith.constant 0 : i32
    return %c0_i32, %c0_i32_0 : i32, i32
  }
  func.func @transform_2(%arg0: i32) -> (i32, i32) {
    %c0_i32 = arith.constant 0 : i32
    %c0_i32_0 = arith.constant 0 : i32
    %c0_i32_1 = arith.constant 0 : i32
    return %c0_i32, %c0_i32_0 : i32, i32
  }
  func.func @transform_3(%arg0: i32) -> (i32, i32, i32) {
    %c0_i32 = arith.constant 0 : i32
    %c0_i32_0 = arith.constant 0 : i32
    %c0_i32_1 = arith.constant 0 : i32
    return %arg0, %c0_i32, %c0_i32_0 : i32, i32, i32
  }
}

</mosaic_0001>

<llo_original>
// kernel: patch_embedding.2
$region0: #{patch_embedding.2}
  #allocation0 [shape = 'u32[]', space=smem, size = 0x4, offset = 0x4, fixed_abs, tag = 'smem constant byte address 0x4 - core index']
  #allocation1 [shape = 'u32[144,128]{1,0:T(1,128)}', space=vmem, size = 0x12000, scoped, tag = 'internal scratch']
  #allocation2 [shape = 'u32[2048]{0}', space=vmem, size = 0x2000, scoped, tag = 'scoped memory for patch_embedding.2']
  #allocation3 [shape = 'u32[2048]{0}', space=vmem, size = 0x2000, scoped, tag = 'scoped memory for patch_embedding.2']
  #allocation4 [shape = 'u32[2048]{0}', space=vmem, size = 0x2000, scoped, tag = 'scoped memory for patch_embedding.2']
  #allocation5 [shape = 'u32[2048]{0}', space=vmem, size = 0x2000, scoped, tag = 'scoped memory for patch_embedding.2']
  #allocation6 [shape = 'u32[2048]{0}', space=vmem, size = 0x2000, scoped, tag = 'scoped memory for patch_embedding.2']
  %s0 = inlined_call_operand.vmem [shape: f32[16,128], index: 0, kind: input, shape index: {}]
  %s1 = inlined_call_operand.vmem [shape: bf16[256,128], index: 1, kind: input, shape index: {}]
  %s2 = inlined_call_operand.vmem [shape: bf16[2,4,192], index: 2, kind: input, shape index: {}]
  %s3 = inlined_call_operand.<no memory space> [shape: bf16[], index: 3, kind: input, shape index: {}]
  %s4 = inlined_call_operand.vmem [shape: f32[2,16,128], index: 4, kind: output, shape index: {}]
  %s5 = sld [smem:[#allocation0]]
  $region45: #{patch_embedding.2} parent=0
    _
  %s7 = ssub.s32 1, %s5
  %s8 = scalar_select 0, %s7, %s5
  %v9 = vstv %s3
  %v10 = vunpack.i.l.bf16 %v9
  %v12 = vunpack.i.h.bf16 %v9
  loop: start=0, step=1, limit=4
  $region2: #{patch_embedding.2} parent=0 // loop_pre_header
    _
  $region3: #{patch_embedding.2} parent=0 // loop_header
    %s15 = sphi 0, %s19
    %p16 = scmp.ge.s32.totalorder %s15, 4
    %s29 = sphi 0, %s31
    %s32 = sphi 0, %s29
    %s33 = sphi 0, %s32
    %s49 = sphi 0, %s33
    %s53 = sphi 0, %s53
    %s55 = sphi 0, %s53
    %s56 = sphi 0, %s55
    %s70 = sphi 0, %s56
    %s74 = sphi 0, %s74
    %s76 = sphi 0, %s74
    %s77 = sphi 0, %s76
    %s91 = sphi 0, %s77
    %s97 = sphi 0, %s99
    %s100 = sphi 0, %s97
    %s101 = sphi 0, %s100
    %s117 = sphi 0, %s101
  $region4: #{patch_embedding.2} parent=0 // loop_header_branch
    %18 = sbr.rel (%p16) target = $region8
  $region5: #{patch_embedding.2} parent=0 // loop_body
    %s20 = ssub.s32 %s15, 1
    %s21 = ssub.s32 %s15, 2
    %s22 = sadd.s32 %s15, 1
    %s25 = ssub.s32 %s15, %s22
    %s26 = ssub.s32 0, 0
    %s27 = sor.u32 %s25, %s26
    %p28 = scmp.eq.s32.totalorder %s27, 0
    %s30 = sadd.s32 %s29, 1
    %s31 = scalar_select %p28, %s29, %s30
    %p34 = pneg %p28
    %p35 = scmp.eq.s32.totalorder %s15, 1
    %p36 = por %p34, %p35
    %p37 = scmp.ne.s32.totalorder %s29, %s32
    %p38 = scmp.eq.s32.totalorder %s15, 0
    %p39 = por %p37, %p38
    %p40 = scmp.ne.s32.totalorder %s29, %s32
    %p41 = scmp.eq.s32.totalorder %s20, 1
    %p42 = por %p40, %p41
    %p43 = scmp.ne.s32.totalorder %s32, %s33
    %p44 = scmp.eq.s32.totalorder %s20, 0
    %p45 = por %p43, %p44
    %p46 = scmp.ne.s32.totalorder %s32, %s33
    %p47 = scmp.eq.s32.totalorder %s21, 1
    %p48 = por %p46, %p47
    %p50 = scmp.ne.s32.totalorder %s33, %s49
    %p51 = scmp.eq.s32.totalorder %s21, 0
    %p52 = por %p50, %p51
    %s54 = sadd.s32 %s53, 1
    %p57 = scmp.eq.s32.totalorder %s15, 1
    %p58 = scmp.ne.s32.totalorder %s53, %s55
    %p59 = scmp.eq.s32.totalorder %s15, 0
    %p60 = por %p58, %p59
    %p61 = scmp.ne.s32.totalorder %s53, %s55
    %p62 = scmp.eq.s32.totalorder %s20, 1
    %p63 = por %p61, %p62
    %p64 = scmp.ne.s32.totalorder %s55, %s56
    %p65 = scmp.eq.s32.totalorder %s20, 0
    %p66 = por %p64, %p65
    %p67 = scmp.ne.s32.totalorder %s55, %s56
    %p68 = scmp.eq.s32.totalorder %s21, 1
    %p69 = por %p67, %p68
    %p71 = scmp.ne.s32.totalorder %s56, %s70
    %p72 = scmp.eq.s32.totalorder %s21, 0
    %p73 = por %p71, %p72
    %s75 = sadd.s32 %s74, 1
    %p78 = scmp.eq.s32.totalorder %s15, 1
    %p79 = scmp.ne.s32.totalorder %s74, %s76
    %p80 = scmp.eq.s32.totalorder %s15, 0
    %p81 = por %p79, %p80
    %p82 = scmp.ne.s32.totalorder %s74, %s76
    %p83 = scmp.eq.s32.totalorder %s20, 1
    %p84 = por %p82, %p83
    %p85 = scmp.ne.s32.totalorder %s76, %s77
    %p86 = scmp.eq.s32.totalorder %s20, 0
    %p87 = por %p85, %p86
    %p88 = scmp.ne.s32.totalorder %s76, %s77
    %p89 = scmp.eq.s32.totalorder %s21, 1
    %p90 = por %p88, %p89
    %p92 = scmp.ne.s32.totalorder %s77, %s91
    %p93 = scmp.eq.s32.totalorder %s21, 0
    %p94 = por %p92, %p93
    %s95 = ssub.s32 %s15, %s22
    %p96 = scmp.eq.s32.totalorder %s95, 0
    %s98 = sadd.s32 %s97, 1
    %s99 = scalar_select %p96, %s97, %s98
    %p102 = pneg %p96
    %p103 = scmp.eq.s32.totalorder %s15, 1
    %p104 = por %p102, %p103
    %p105 = scmp.ne.s32.totalorder %s97, %s100
    %p106 = scmp.eq.s32.totalorder %s15, 0
    %p107 = por %p105, %p106
    %p108 = scmp.ne.s32.totalorder %s97, %s100
    %p109 = scmp.eq.s32.totalorder %s20, 1
    %p110 = por %p108, %p109
    %p111 = scmp.ne.s32.totalorder %s100, %s101
    %p112 = scmp.eq.s32.totalorder %s20, 0
    %p113 = por %p111, %p112
    %p114 = scmp.ne.s32.totalorder %s100, %s101
    %p115 = scmp.eq.s32.totalorder %s21, 1
    %p116 = por %p114, %p115
    %p118 = scmp.ne.s32.totalorder %s101, %s117
    %p119 = scmp.eq.s32.totalorder %s21, 0
    %p120 = por %p118, %p119
    %p121 = scmp.le.s32.totalorder 1, %s15
    %p122 = scmp.lt.s32.totalorder %s15, 3
    %p123 = pnand %p121, %p122
    %p124 = pneg %p123
    // Predicated region
    $region9: #{patch_embedding.2} parent=5 // pred_check
      _
    $region10: #{patch_embedding.2} parent=5 // pred_check_branch
      %126 = sbr.rel (%p123) target = $region12
    $region11: #{patch_embedding.2} parent=5 // pred_region
      %s127 = ssub.s32 %s15, 1
      // Predicated region
      $region13: #{patch_embedding.2} parent=11 // pred_check
        %p128 = pneg %p66
      $region14: #{patch_embedding.2} parent=11 // pred_check_branch
        %130 = sbr.rel (%p128) target = $region16
      $region15: #{patch_embedding.2} parent=11 // pred_region
        _
      $region16: #{patch_embedding.2} parent=11 // pred_fallthru
        _
      // Predicated region
      $region17: #{patch_embedding.2} parent=11 // pred_check
        %p131 = pneg %p87
      $region18: #{patch_embedding.2} parent=11 // pred_check_branch
        %133 = sbr.rel (%p131) target = $region20
      $region19: #{patch_embedding.2} parent=11 // pred_region
        _
      $region20: #{patch_embedding.2} parent=11 // pred_fallthru
        _
    $region12: #{patch_embedding.2} parent=5 // pred_fallthru
      _
    %p134 = scmp.lt.s32.totalorder %s15, 2
    // Predicated region
    $region21: #{patch_embedding.2} parent=5 // pred_check
      %p135 = pneg %p134
    $region22: #{patch_embedding.2} parent=5 // pred_check_branch
      %137 = sbr.rel (%p135) target = $region24
    $region23: #{patch_embedding.2} parent=5 // pred_region
      // Predicated region
      $region25: #{patch_embedding.2} parent=23 // pred_check
        %p138 = pneg %p39
      $region26: #{patch_embedding.2} parent=23 // pred_check_branch
        %140 = sbr.rel (%p138) target = $region28
      $region27: #{patch_embedding.2} parent=23 // pred_region
        %s142 = ssub.s32 1, 0
        %s143 = smul.u32 32, %s142
        %s144 = smul.u32 %s143, 2
        %p145 = scmp.lt.s32.totalorder %s15, 1
        %s146 = scalar_select %p145, %s15, 1
        %p147 = scmp.lt.s32.totalorder 0, 0
        %s148 = scalar_select %p147, 0, 0
        %s149 = smul.addr %s148, 2
        %s150 = smul.addr %s146, 2
        %s151 = sadd.s32 %s149, %s150
        %s152 = smul.addr %s151, 2
        %s153 = scalar_lea.vmem %s2, %s152
        %s155 = ssub.s32 1, 0
        %s156 = smul.u32 32, %s155
        %s157 = smul.u32 %s156, 2
      $region28: #{patch_embedding.2} parent=23 // pred_fallthru
        _
    $region24: #{patch_embedding.2} parent=5 // pred_fallthru
      _
    %p158 = scmp.le.s32.totalorder 1, %s15
    %p159 = scmp.lt.s32.totalorder %s15, 3
    %p160 = pnand %p158, %p159
    %p161 = pneg %p160
    // Predicated region
    $region29: #{patch_embedding.2} parent=5 // pred_check
      _
    $region30: #{patch_embedding.2} parent=5 // pred_check_branch
      %163 = sbr.rel (%p160) target = $region32
    $region31: #{patch_embedding.2} parent=5 // pred_region
      #allocation7 [shape = 'u8[8192]{0}', space=vmem, size = 0x2000, dematerialized = true, scoped, tag = 'FusionAdapter Buffer %fusion.1 = bf16[2,16,256]{2,1,0:T(8,128)(2,1)} fusion(%param_2.1, %param_3), kind=kLoop, calls=%fused_computation.2.clone, metadata={op_name="jit(patch_embedding)/jit(_pad)/pad" stack_frame_id=11}']
      %s164 = ssub.s32 %s15, 1
      %s166 = ssub.s32 1, 0
      %s167 = smul.u32 32, %s166
      %s168 = smul.u32 %s167, 2
      %p169 = scmp.lt.s32.totalorder %s20, 1
      %s170 = scalar_select %p169, %s20, 1
      %p171 = scmp.lt.s32.totalorder 0, 0
      %s172 = scalar_select %p171, 0, 0
      %s173 = smul.addr %s172, 2
      %s174 = smul.addr %s170, 2
      %s175 = sadd.s32 %s173, %s174
      %s176 = smul.addr %s175, 2
      %s177 = scalar_lea.vmem %s2, %s176
      %p178 = pneg %p45
      %p179 = pneg %p42
      %p180 = pneg %p66
      %p181 = pneg %p63
      %p182 = pneg %p87
      %p183 = pneg %p84
      %p184 = pneg %p113
      %p185 = pneg %p110
      %p186 = scmp.lt.s32.totalorder %s20, 1
      %s187 = scalar_select %p186, %s20, 1
      %s188 = smul.addr %s187, 2
      %s189 = smul.addr %s188, 8
      %s190 = scalar_lea.vmem %s4, %s189
      %s192 = ssub.s32 1, 0
      %s193 = smul.u32 32, %s192
      %s194 = smul.u32 %s193, 2
      %p195 = scmp.lt.s32.totalorder %s20, 1
      %s196 = scalar_select %p195, %s20, 1
      %p197 = scmp.lt.s32.totalorder 0, 0
      %s198 = scalar_select %p197, 0, 0
      %s199 = smul.addr %s198, 2
      %s200 = smul.addr %s196, 2
      %s201 = sadd.s32 %s199, %s200
      %s202 = smul.addr %s201, 2
      %s203 = scalar_lea.vmem %s2, %s202
      %s205 = ssub.s32 1, 0
      %s206 = smul.u32 32, %s205
      %s207 = smul.u32 %s206, 2
      %p208 = scmp.lt.s32.totalorder %s20, 1
      %s209 = scalar_select %p208, %s20, 1
      %s210 = smul.addr %s209, 2
      %s211 = smul.addr %s210, 8
      %s212 = scalar_lea.vmem %s4, %s211
      %s213 = ssub.s32 0, 0
      %p214 = scmp.lt.s32.totalorder %s213, 0
      %s215 = scalar_select %p214, 0, 255
      %s216 = sand.u32 15, %s215
      %s217 = sshrl.u32 %s216, 1
      %s218 = sor.u32 %s216, %s217
      %s219 = sand.u32 %s218, 5
      %s220 = sshrl.u32 %s219, 1
      %s221 = sor.u32 %s219, %s220
      %s222 = sand.u32 3, %s221
      %v223 = vld [vmem:[%s203] sm:%s222]
      %v224 = vunpack.c.l.bf16 %v223
      %v225 = vunpack.c.h.bf16 %v223
      %v226 = vlaneseq
      %v227 = vshrl.u32 %v226, 7
      %v228 = vadd.s32 %v227, 8
      %vm229 = vcmp.lt.s32.totalorder %v228, 12
      %v230 = vsel %vm229, %v224, %v10
      %v231 = vlaneseq
      %v232 = vand.u32 %v231, 127
      %vm234 = vcmp.lt.s32.totalorder %v232, 192
      %v235 = vsel %vm234, %v230, %v10
      %vm236 = vcmask 1046528
      %v237 = vsel %vm236, %v235, %v10
      %v238 = vrot.slane %v237, 7
      %v239 = vpack.c.bf16 0.0, %v238
      %241 = vst [vmem:[#allocation7] sm:$0xf] %v239
      %s242 = scalar_lea.vmem %s203, 2
      %s243 = ssub.s32 0, 0
      %p244 = scmp.lt.s32.totalorder %s243, 0
      %s245 = scalar_select %p244, 0, 255
      %s246 = sand.u32 15, %s245
      %s247 = sshrl.u32 %s246, 1
      %s248 = sor.u32 %s246, %s247
      %s249 = sand.u32 %s248, 5
      %s250 = sshrl.u32 %s249, 1
      %s251 = sor.u32 %s249, %s250
      %s252 = sand.u32 3, %s251
      %v253 = vld [vmem:[%s242] sm:%s252]
      %v254 = vunpack.c.l.bf16 %v253
      %v255 = vunpack.c.h.bf16 %v253
      %s256 = scalar_lea.vmem %s203, 2
      %v257 = vlaneseq
      %v258 = vshrl.u32 %v257, 7
      %v259 = vadd.s32 %v258, 8
      %vm260 = vcmp.lt.s32.totalorder %v259, 12
      %v261 = vsel %vm260, %v254, %v10
      %v262 = vlaneseq
      %v263 = vand.u32 %v262, 127
      %v264 = vadd.s32 %v263, 128
      %vm265 = vcmp.lt.s32.totalorder %v264, 192
      %v266 = vsel %vm265, %v261, %v10
      %vm267 = vcmask 1046528
      %v268 = vsel %vm267, %v266, %v10
      %v269 = vrot.slane %v268, 7
      %s270 = scalar_lea.vmem [#allocation7], 4
      %v271 = vpack.c.bf16 0.0, %v269
      %273 = vst [vmem:[%s270] sm:$0xf] %v271
      %vm274 = vcmask 1046528
      %v275 = vsel %vm274, %v10, %v235
      %v276 = vrot.slane %v275, 7
      %s277 = scalar_lea.vmem [#allocation7], 8
      %v278 = vpack.c.bf16 0.0, %v276
      %280 = vst [vmem:[%s277] sm:$0xf] %v278
      %s281 = scalar_lea.vmem %s203, 2
      %vm282 = vcmask 1046528
      %v283 = vsel %vm282, %v10, %v266
      %v284 = vrot.slane %v283, 7
      %s285 = scalar_lea.vmem [#allocation7], 12
      %v286 = vpack.c.bf16 0.0, %v284
      %288 = vst [vmem:[%s285] sm:$0xf] %v286
      %v290 = vld [vmem:[#allocation7] sm:$0xff]
      %v291 = vld [vmem:[#allocation7 + $0x8] sm:$0xff]
      %v292 = vld [vmem:[%s1] sm:$0xf]
      %v293 = vld [vmem:[%s1 + $0x4] sm:$0xf]
      %v294 = vld [vmem:[%s1 + $0x8] sm:$0xf]
      %v295 = vld [vmem:[%s1 + $0xc] sm:$0xf]
      %v296 = vld [vmem:[%s1 + $0x10] sm:$0xf]
      %v297 = vld [vmem:[%s1 + $0x14] sm:$0xf]
      %v298 = vld [vmem:[%s1 + $0x18] sm:$0xf]
      %v299 = vld [vmem:[%s1 + $0x1c] sm:$0xf]
      %v300 = vld [vmem:[%s1 + $0x20] sm:$0xf]
      %v301 = vld [vmem:[%s1 + $0x24] sm:$0xf]
      %v302 = vld [vmem:[%s1 + $0x28] sm:$0xf]
      %v303 = vld [vmem:[%s1 + $0x2c] sm:$0xf]
      %v304 = vld [vmem:[%s1 + $0x30] sm:$0xf]
      %v305 = vld [vmem:[%s1 + $0x34] sm:$0xf]
      %v306 = vld [vmem:[%s1 + $0x38] sm:$0xf]
      %v307 = vld [vmem:[%s1 + $0x3c] sm:$0xf]
      %v308 = vld [vmem:[%s1 + $0x40] sm:$0xf]
      %v309 = vld [vmem:[%s1 + $0x44] sm:$0xf]
      %v310 = vld [vmem:[%s1 + $0x48] sm:$0xf]
      %v311 = vld [vmem:[%s1 + $0x4c] sm:$0xf]
      %v312 = vld [vmem:[%s1 + $0x50] sm:$0xf]
      %v313 = vld [vmem:[%s1 + $0x54] sm:$0xf]
      %v314 = vld [vmem:[%s1 + $0x58] sm:$0xf]
      %v315 = vld [vmem:[%s1 + $0x5c] sm:$0xf]
      %v316 = vld [vmem:[%s1 + $0x60] sm:$0xf]
      %v317 = vld [vmem:[%s1 + $0x64] sm:$0xf]
      %v318 = vld [vmem:[%s1 + $0x68] sm:$0xf]
      %v319 = vld [vmem:[%s1 + $0x6c] sm:$0xf]
      %v320 = vld [vmem:[%s1 + $0x70] sm:$0xf]
      %v321 = vld [vmem:[%s1 + $0x74] sm:$0xf]
      %v322 = vld [vmem:[%s1 + $0x78] sm:$0xf]
      %v323 = vld [vmem:[%s1 + $0x7c] sm:$0xf]
      %v326 = vunpack.c.l.b16 %v290
      %v327 = vunpack.c.h.b16 %v290
      %v328 = vunpack.c.l.b16 %v291
      %v329 = vunpack.c.h.b16 %v291
      %v330 = vpack.c.b16 %v328, %v326
      %v331 = vpack.c.b16 %v329, %v327
      %v366 = vunpack.c.l.b16 %v292
      %v367 = vunpack.c.l.b16 %v293
      %v368 = vunpack.c.l.b16 %v294
      %v369 = vunpack.c.l.b16 %v295
      %v370 = vunpack.c.l.b16 %v296
      %v371 = vunpack.c.l.b16 %v297
      %v372 = vunpack.c.l.b16 %v298
      %v373 = vunpack.c.l.b16 %v299
      %v374 = vunpack.c.l.b16 %v300
      %v375 = vunpack.c.l.b16 %v301
      %v376 = vunpack.c.l.b16 %v302
      %v377 = vunpack.c.l.b16 %v303
      %v378 = vunpack.c.l.b16 %v304
      %v379 = vunpack.c.l.b16 %v305
      %v380 = vunpack.c.l.b16 %v306
      %v381 = vunpack.c.l.b16 %v307
      %v382 = vunpack.c.l.b16 %v308
      %v383 = vunpack.c.l.b16 %v309
      %v384 = vunpack.c.l.b16 %v310
      %v385 = vunpack.c.l.b16 %v311
      %v386 = vunpack.c.l.b16 %v312
      %v387 = vunpack.c.l.b16 %v313
      %v388 = vunpack.c.l.b16 %v314
      %v389 = vunpack.c.l.b16 %v315
      %v390 = vunpack.c.l.b16 %v316
      %v391 = vunpack.c.l.b16 %v317
      %v392 = vunpack.c.l.b16 %v318
      %v393 = vunpack.c.l.b16 %v319
      %v394 = vunpack.c.l.b16 %v320
      %v395 = vunpack.c.l.b16 %v321
      %v396 = vunpack.c.l.b16 %v322
      %v397 = vunpack.c.l.b16 %v323
      %v398 = vpack.c.b16 %v367, %v366
      %v399 = vpack.c.b16 %v369, %v368
      %v400 = vpack.c.b16 %v371, %v370
      %v401 = vpack.c.b16 %v373, %v372
      %v402 = vpack.c.b16 %v375, %v374
      %v403 = vpack.c.b16 %v377, %v376
      %v404 = vpack.c.b16 %v379, %v378
      %v405 = vpack.c.b16 %v381, %v380
      %v406 = vpack.c.b16 %v383, %v382
      %v407 = vpack.c.b16 %v385, %v384
      %v408 = vpack.c.b16 %v387, %v386
      %v409 = vpack.c.b16 %v389, %v388
      %v410 = vpack.c.b16 %v391, %v390
      %v411 = vpack.c.b16 %v393, %v392
      %v412 = vpack.c.b16 %v395, %v394
      %v413 = vpack.c.b16 %v397, %v396
      %430 = vmatprep.subr.bf16.mxu0 0
      %431 = vmatpush1.bf16.msra.mxu0 %v398
      %432 = vmatprep.subr.bf16.mxu0 0
      %433 = vmatpush1.bf16.msra.mxu0 %v399
      %434 = vmatprep.subr.bf16.mxu0 0
      %435 = vmatpush1.bf16.msra.mxu0 %v400
      %436 = vmatprep.subr.bf16.mxu0 0
      %437 = vmatpush1.bf16.msra.mxu0 %v401
      %438 = vmatprep.subr.bf16.mxu0 0
      %439 = vmatpush1.bf16.msra.mxu0 %v402
      %440 = vmatprep.subr.bf16.mxu0 0
      %441 = vmatpush1.bf16.msra.mxu0 %v403
      %442 = vmatprep.subr.bf16.mxu0 0
      %443 = vmatpush1.bf16.msra.mxu0 %v404
      %444 = vmatprep.subr.bf16.mxu0 0
      %445 = vmatpush1.bf16.msra.mxu0 %v405
      %446 = vmatprep.subr.bf16.mxu0 0
      %447 = vmatpush1.bf16.msra.mxu0 %v406
      %448 = vmatprep.subr.bf16.mxu0 0
      %449 = vmatpush1.bf16.msra.mxu0 %v407
      %450 = vmatprep.subr.bf16.mxu0 0
      %451 = vmatpush1.bf16.msra.mxu0 %v408
      %452 = vmatprep.subr.bf16.mxu0 0
      %453 = vmatpush1.bf16.msra.mxu0 %v409
      %454 = vmatprep.subr.bf16.mxu0 0
      %455 = vmatpush1.bf16.msra.mxu0 %v410
      %456 = vmatprep.subr.bf16.mxu0 0
      %457 = vmatpush1.bf16.msra.mxu0 %v411
      %458 = vmatprep.subr.bf16.mxu0 0
      %459 = vmatpush1.bf16.msra.mxu0 %v412
      %460 = vmatprep.subr.bf16.mxu0 0
      %461 = vmatpush1.bf16.msra.mxu0 %v413
      %462 = vmatprep.mubr.bf16.mxu0 %v331
      %463 = vmatmul.mubr.bf16.gmra.mrb[0].mxu0 %v330
      %v464 = vpop.f32.mrb[0].mxu0
      %v465 = vadd.f32 0.0, %v464
      %v466 = vpop.f32.mrb[0].mxu0
      %v467 = vpop.f32.mrb[0].mxu0
      %v468 = vadd.f32 0.0, %v467
      %v469 = vpop.f32.mrb[0].mxu0
      %470 = vdwg.mxu0
      %v471 = vld [vmem:[%s0] sm:$0xff]
      %v472 = vld [vmem:[%s0 + $0x8] sm:$0xff]
      %v473 = vadd.f32 %v465, %v471
      %v474 = vadd.f32 %v468, %v472
      %475 = vst [vmem:[%s212] sm:$0xff] %v473
      %476 = vst [vmem:[%s212 + $0x8] sm:$0xff] %v474
      %p477 = scmp.lt.s32.totalorder %s20, 1
      %s478 = scalar_select %p477, %s20, 1
      %s479 = smul.addr %s478, 2
      %s480 = smul.addr %s479, 8
      %s481 = scalar_lea.vmem %s4, %s480
      // Predicated region
      $region33: #{patch_embedding.2} parent=31 // pred_check
        %p482 = pneg %p110
      $region34: #{patch_embedding.2} parent=31 // pred_check_branch
        %484 = sbr.rel (%p482) target = $region36
      $region35: #{patch_embedding.2} parent=31 // pred_region
        _
      $region36: #{patch_embedding.2} parent=31 // pred_fallthru
        _
    $region32: #{patch_embedding.2} parent=5 // pred_fallthru
      _
    %p485 = scmp.le.s32.totalorder 2, %s15
    // Predicated region
    $region37: #{patch_embedding.2} parent=5 // pred_check
      %p486 = pneg %p485
    $region38: #{patch_embedding.2} parent=5 // pred_check_branch
      %488 = sbr.rel (%p486) target = $region40
    $region39: #{patch_embedding.2} parent=5 // pred_region
      %s489 = ssub.s32 %s15, 2
      // Predicated region
      $region41: #{patch_embedding.2} parent=39 // pred_check
        %p490 = pneg %p116
      $region42: #{patch_embedding.2} parent=39 // pred_check_branch
        %492 = sbr.rel (%p490) target = $region44
      $region43: #{patch_embedding.2} parent=39 // pred_region
        %p493 = scmp.lt.s32.totalorder %s21, 1
        %s494 = scalar_select %p493, %s21, 1
        %s495 = smul.addr %s494, 2
        %s496 = smul.addr %s495, 8
        %s497 = scalar_lea.vmem %s4, %s496
      $region44: #{patch_embedding.2} parent=39 // pred_fallthru
        _
    $region40: #{patch_embedding.2} parent=5 // pred_fallthru
      _
  $region6: #{patch_embedding.2} parent=0 // loop_footer
    %s19 = sadd.s32 1, %s15
  $region7: #{patch_embedding.2} parent=0 // loop_footer_branch
    %14 = sbr.rel target = $region3
  $region8: #{patch_embedding.2} parent=0 // loop_exit
    _

// kernel: patch_embedding.1
$region0: #{patch_embedding.1}
  #allocation0 [shape = 'u32[]', space=smem, size = 0x4, offset = 0x4, fixed_abs, tag = 'smem constant byte address 0x4 - core index']
  #allocation1 [shape = 'u32[144,128]{1,0:T(1,128)}', space=vmem, size = 0x12000, scoped, tag = 'internal scratch']
  %s0 = inlined_call_operand.vmem [shape: bf16[2,16,256], index: 0, kind: input, shape index: {}]
  %s1 = inlined_call_operand.vmem [shape: f32[16,128], index: 1, kind: input, shape index: {}]
  %s2 = inlined_call_operand.vmem [shape: bf16[256,128], index: 2, kind: input, shape index: {}]
  %s3 = inlined_call_operand.vmem [shape: f32[2,16,128], index: 3, kind: output, shape index: {}]
  %s4 = sld [smem:[#allocation0]]
  $region45: #{patch_embedding.1} parent=0
    _
  %s6 = ssub.s32 1, %s4
  %s7 = scalar_select 0, %s6, %s4
  loop: start=0, step=1, limit=4
  $region2: #{patch_embedding.1} parent=0 // loop_pre_header
    _
  $region3: #{patch_embedding.1} parent=0 // loop_header
    %s9 = sphi 0, %s13
    %p10 = scmp.ge.s32.totalorder %s9, 4
    %s19 = sphi 0, %s21
    %s22 = sphi 0, %s19
    %s23 = sphi 0, %s22
    %s39 = sphi 0, %s23
    %s43 = sphi 0, %s43
    %s45 = sphi 0, %s43
    %s46 = sphi 0, %s45
    %s60 = sphi 0, %s46
    %s64 = sphi 0, %s64
    %s66 = sphi 0, %s64
    %s67 = sphi 0, %s66
    %s81 = sphi 0, %s67
    %s87 = sphi 0, %s89
    %s90 = sphi 0, %s87
    %s91 = sphi 0, %s90
    %s107 = sphi 0, %s91
  $region4: #{patch_embedding.1} parent=0 // loop_header_branch
    %12 = sbr.rel (%p10) target = $region8
  $region5: #{patch_embedding.1} parent=0 // loop_body
    %s14 = ssub.s32 %s9, 1
    %s15 = ssub.s32 %s9, 2
    %s16 = sadd.s32 %s9, 1
    %s17 = ssub.s32 %s9, %s16
    %p18 = scmp.eq.s32.totalorder %s17, 0
    %s20 = sadd.s32 %s19, 1
    %s21 = scalar_select %p18, %s19, %s20
    %p24 = pneg %p18
    %p25 = scmp.eq.s32.totalorder %s9, 1
    %p26 = por %p24, %p25
    %p27 = scmp.ne.s32.totalorder %s19, %s22
    %p28 = scmp.eq.s32.totalorder %s9, 0
    %p29 = por %p27, %p28
    %p30 = scmp.ne.s32.totalorder %s19, %s22
    %p31 = scmp.eq.s32.totalorder %s14, 1
    %p32 = por %p30, %p31
    %p33 = scmp.ne.s32.totalorder %s22, %s23
    %p34 = scmp.eq.s32.totalorder %s14, 0
    %p35 = por %p33, %p34
    %p36 = scmp.ne.s32.totalorder %s22, %s23
    %p37 = scmp.eq.s32.totalorder %s15, 1
    %p38 = por %p36, %p37
    %p40 = scmp.ne.s32.totalorder %s23, %s39
    %p41 = scmp.eq.s32.totalorder %s15, 0
    %p42 = por %p40, %p41
    %s44 = sadd.s32 %s43, 1
    %p47 = scmp.eq.s32.totalorder %s9, 1
    %p48 = scmp.ne.s32.totalorder %s43, %s45
    %p49 = scmp.eq.s32.totalorder %s9, 0
    %p50 = por %p48, %p49
    %p51 = scmp.ne.s32.totalorder %s43, %s45
    %p52 = scmp.eq.s32.totalorder %s14, 1
    %p53 = por %p51, %p52
    %p54 = scmp.ne.s32.totalorder %s45, %s46
    %p55 = scmp.eq.s32.totalorder %s14, 0
    %p56 = por %p54, %p55
    %p57 = scmp.ne.s32.totalorder %s45, %s46
    %p58 = scmp.eq.s32.totalorder %s15, 1
    %p59 = por %p57, %p58
    %p61 = scmp.ne.s32.totalorder %s46, %s60
    %p62 = scmp.eq.s32.totalorder %s15, 0
    %p63 = por %p61, %p62
    %s65 = sadd.s32 %s64, 1
    %p68 = scmp.eq.s32.totalorder %s9, 1
    %p69 = scmp.ne.s32.totalorder %s64, %s66
    %p70 = scmp.eq.s32.totalorder %s9, 0
    %p71 = por %p69, %p70
    %p72 = scmp.ne.s32.totalorder %s64, %s66
    %p73 = scmp.eq.s32.totalorder %s14, 1
    %p74 = por %p72, %p73
    %p75 = scmp.ne.s32.totalorder %s66, %s67
    %p76 = scmp.eq.s32.totalorder %s14, 0
    %p77 = por %p75, %p76
    %p78 = scmp.ne.s32.totalorder %s66, %s67
    %p79 = scmp.eq.s32.totalorder %s15, 1
    %p80 = por %p78, %p79
    %p82 = scmp.ne.s32.totalorder %s67, %s81
    %p83 = scmp.eq.s32.totalorder %s15, 0
    %p84 = por %p82, %p83
    %s85 = ssub.s32 %s9, %s16
    %p86 = scmp.eq.s32.totalorder %s85, 0
    %s88 = sadd.s32 %s87, 1
    %s89 = scalar_select %p86, %s87, %s88
    %p92 = pneg %p86
    %p93 = scmp.eq.s32.totalorder %s9, 1
    %p94 = por %p92, %p93
    %p95 = scmp.ne.s32.totalorder %s87, %s90
    %p96 = scmp.eq.s32.totalorder %s9, 0
    %p97 = por %p95, %p96
    %p98 = scmp.ne.s32.totalorder %s87, %s90
    %p99 = scmp.eq.s32.totalorder %s14, 1
    %p100 = por %p98, %p99
    %p101 = scmp.ne.s32.totalorder %s90, %s91
    %p102 = scmp.eq.s32.totalorder %s14, 0
    %p103 = por %p101, %p102
    %p104 = scmp.ne.s32.totalorder %s90, %s91
    %p105 = scmp.eq.s32.totalorder %s15, 1
    %p106 = por %p104, %p105
    %p108 = scmp.ne.s32.totalorder %s91, %s107
    %p109 = scmp.eq.s32.totalorder %s15, 0
    %p110 = por %p108, %p109
    %p111 = scmp.le.s32.totalorder 1, %s9
    %p112 = scmp.lt.s32.totalorder %s9, 3
    %p113 = pnand %p111, %p112
    %p114 = pneg %p113
    // Predicated region
    $region9: #{patch_embedding.1} parent=5 // pred_check
      _
    $region10: #{patch_embedding.1} parent=5 // pred_check_branch
      %116 = sbr.rel (%p113) target = $region12
    $region11: #{patch_embedding.1} parent=5 // pred_region
      %s117 = ssub.s32 %s9, 1
      // Predicated region
      $region13: #{patch_embedding.1} parent=11 // pred_check
        %p118 = pneg %p56
      $region14: #{patch_embedding.1} parent=11 // pred_check_branch
        %120 = sbr.rel (%p118) target = $region16
      $region15: #{patch_embedding.1} parent=11 // pred_region
        _
      $region16: #{patch_embedding.1} parent=11 // pred_fallthru
        _
      // Predicated region
      $region17: #{patch_embedding.1} parent=11 // pred_check
        %p121 = pneg %p77
      $region18: #{patch_embedding.1} parent=11 // pred_check_branch
        %123 = sbr.rel (%p121) target = $region20
      $region19: #{patch_embedding.1} parent=11 // pred_region
        _
      $region20: #{patch_embedding.1} parent=11 // pred_fallthru
        _
    $region12: #{patch_embedding.1} parent=5 // pred_fallthru
      _
    %p124 = scmp.lt.s32.totalorder %s9, 2
    // Predicated region
    $region21: #{patch_embedding.1} parent=5 // pred_check
      %p125 = pneg %p124
    $region22: #{patch_embedding.1} parent=5 // pred_check_branch
      %127 = sbr.rel (%p125) target = $region24
    $region23: #{patch_embedding.1} parent=5 // pred_region
      // Predicated region
      $region25: #{patch_embedding.1} parent=23 // pred_check
        %p128 = pneg %p29
      $region26: #{patch_embedding.1} parent=23 // pred_check_branch
        %130 = sbr.rel (%p128) target = $region28
      $region27: #{patch_embedding.1} parent=23 // pred_region
        %p131 = scmp.lt.s32.totalorder %s9, 1
        %s132 = scalar_select %p131, %s9, 1
        %s133 = smul.addr %s132, 4
        %s134 = smul.addr %s133, 4
        %s135 = scalar_lea.vmem %s0, %s134
      $region28: #{patch_embedding.1} parent=23 // pred_fallthru
        _
    $region24: #{patch_embedding.1} parent=5 // pred_fallthru
      _
    %p136 = scmp.le.s32.totalorder 1, %s9
    %p137 = scmp.lt.s32.totalorder %s9, 3
    %p138 = pnand %p136, %p137
    %p139 = pneg %p138
    // Predicated region
    $region29: #{patch_embedding.1} parent=5 // pred_check
      _
    $region30: #{patch_embedding.1} parent=5 // pred_check_branch
      %141 = sbr.rel (%p138) target = $region32
    $region31: #{patch_embedding.1} parent=5 // pred_region
      %s142 = ssub.s32 %s9, 1
      %p143 = scmp.lt.s32.totalorder %s14, 1
      %s144 = scalar_select %p143, %s14, 1
      %s145 = smul.addr %s144, 4
      %s146 = smul.addr %s145, 4
      %s147 = scalar_lea.vmem %s0, %s146
      %p148 = pneg %p35
      %p149 = pneg %p32
      %p150 = pneg %p56
      %p151 = pneg %p53
      %p152 = pneg %p77
      %p153 = pneg %p74
      %p154 = pneg %p103
      %p155 = pneg %p100
      %p156 = scmp.lt.s32.totalorder %s14, 1
      %s157 = scalar_select %p156, %s14, 1
      %s158 = smul.addr %s157, 2
      %s159 = smul.addr %s158, 8
      %s160 = scalar_lea.vmem %s3, %s159
      %p161 = scmp.lt.s32.totalorder %s14, 1
      %s162 = scalar_select %p161, %s14, 1
      %s163 = smul.addr %s162, 4
      %s164 = smul.addr %s163, 4
      %s165 = scalar_lea.vmem %s0, %s164
      %p166 = scmp.lt.s32.totalorder %s14, 1
      %s167 = scalar_select %p166, %s14, 1
      %s168 = smul.addr %s167, 2
      %s169 = smul.addr %s168, 8
      %s170 = scalar_lea.vmem %s3, %s169
      %v172 = vld [vmem:[%s165] sm:$0xff]
      %v173 = vld [vmem:[%s165 + $0x8] sm:$0xff]
      %v174 = vld [vmem:[%s2] sm:$0xf]
      %v175 = vld [vmem:[%s2 + $0x4] sm:$0xf]
      %v176 = vld [vmem:[%s2 + $0x8] sm:$0xf]
      %v177 = vld [vmem:[%s2 + $0xc] sm:$0xf]
      %v178 = vld [vmem:[%s2 + $0x10] sm:$0xf]
      %v179 = vld [vmem:[%s2 + $0x14] sm:$0xf]
      %v180 = vld [vmem:[%s2 + $0x18] sm:$0xf]
      %v181 = vld [vmem:[%s2 + $0x1c] sm:$0xf]
      %v182 = vld [vmem:[%s2 + $0x20] sm:$0xf]
      %v183 = vld [vmem:[%s2 + $0x24] sm:$0xf]
      %v184 = vld [vmem:[%s2 + $0x28] sm:$0xf]
      %v185 = vld [vmem:[%s2 + $0x2c] sm:$0xf]
      %v186 = vld [vmem:[%s2 + $0x30] sm:$0xf]
      %v187 = vld [vmem:[%s2 + $0x34] sm:$0xf]
      %v188 = vld [vmem:[%s2 + $0x38] sm:$0xf]
      %v189 = vld [vmem:[%s2 + $0x3c] sm:$0xf]
      %v190 = vld [vmem:[%s2 + $0x40] sm:$0xf]
      %v191 = vld [vmem:[%s2 + $0x44] sm:$0xf]
      %v192 = vld [vmem:[%s2 + $0x48] sm:$0xf]
      %v193 = vld [vmem:[%s2 + $0x4c] sm:$0xf]
      %v194 = vld [vmem:[%s2 + $0x50] sm:$0xf]
      %v195 = vld [vmem:[%s2 + $0x54] sm:$0xf]
      %v196 = vld [vmem:[%s2 + $0x58] sm:$0xf]
      %v197 = vld [vmem:[%s2 + $0x5c] sm:$0xf]
      %v198 = vld [vmem:[%s2 + $0x60] sm:$0xf]
      %v199 = vld [vmem:[%s2 + $0x64] sm:$0xf]
      %v200 = vld [vmem:[%s2 + $0x68] sm:$0xf]
      %v201 = vld [vmem:[%s2 + $0x6c] sm:$0xf]
      %v202 = vld [vmem:[%s2 + $0x70] sm:$0xf]
      %v203 = vld [vmem:[%s2 + $0x74] sm:$0xf]
      %v204 = vld [vmem:[%s2 + $0x78] sm:$0xf]
      %v205 = vld [vmem:[%s2 + $0x7c] sm:$0xf]
      %v208 = vunpack.c.l.b16 %v172
      %v209 = vunpack.c.h.b16 %v172
      %v210 = vunpack.c.l.b16 %v173
      %v211 = vunpack.c.h.b16 %v173
      %v212 = vpack.c.b16 %v210, %v208
      %v213 = vpack.c.b16 %v211, %v209
      %v248 = vunpack.c.l.b16 %v174
      %v249 = vunpack.c.l.b16 %v175
      %v250 = vunpack.c.l.b16 %v176
      %v251 = vunpack.c.l.b16 %v177
      %v252 = vunpack.c.l.b16 %v178
      %v253 = vunpack.c.l.b16 %v179
      %v254 = vunpack.c.l.b16 %v180
      %v255 = vunpack.c.l.b16 %v181
      %v256 = vunpack.c.l.b16 %v182
      %v257 = vunpack.c.l.b16 %v183
      %v258 = vunpack.c.l.b16 %v184
      %v259 = vunpack.c.l.b16 %v185
      %v260 = vunpack.c.l.b16 %v186
      %v261 = vunpack.c.l.b16 %v187
      %v262 = vunpack.c.l.b16 %v188
      %v263 = vunpack.c.l.b16 %v189
      %v264 = vunpack.c.l.b16 %v190
      %v265 = vunpack.c.l.b16 %v191
      %v266 = vunpack.c.l.b16 %v192
      %v267 = vunpack.c.l.b16 %v193
      %v268 = vunpack.c.l.b16 %v194
      %v269 = vunpack.c.l.b16 %v195
      %v270 = vunpack.c.l.b16 %v196
      %v271 = vunpack.c.l.b16 %v197
      %v272 = vunpack.c.l.b16 %v198
      %v273 = vunpack.c.l.b16 %v199
      %v274 = vunpack.c.l.b16 %v200
      %v275 = vunpack.c.l.b16 %v201
      %v276 = vunpack.c.l.b16 %v202
      %v277 = vunpack.c.l.b16 %v203
      %v278 = vunpack.c.l.b16 %v204
      %v279 = vunpack.c.l.b16 %v205
      %v280 = vpack.c.b16 %v249, %v248
      %v281 = vpack.c.b16 %v251, %v250
      %v282 = vpack.c.b16 %v253, %v252
      %v283 = vpack.c.b16 %v255, %v254
      %v284 = vpack.c.b16 %v257, %v256
      %v285 = vpack.c.b16 %v259, %v258
      %v286 = vpack.c.b16 %v261, %v260
      %v287 = vpack.c.b16 %v263, %v262
      %v288 = vpack.c.b16 %v265, %v264
      %v289 = vpack.c.b16 %v267, %v266
      %v290 = vpack.c.b16 %v269, %v268
      %v291 = vpack.c.b16 %v271, %v270
      %v292 = vpack.c.b16 %v273, %v272
      %v293 = vpack.c.b16 %v275, %v274
      %v294 = vpack.c.b16 %v277, %v276
      %v295 = vpack.c.b16 %v279, %v278
      %312 = vmatprep.subr.bf16.mxu0 0
      %313 = vmatpush1.bf16.msra.mxu0 %v280
      %314 = vmatprep.subr.bf16.mxu0 0
      %315 = vmatpush1.bf16.msra.mxu0 %v281
      %316 = vmatprep.subr.bf16.mxu0 0
      %317 = vmatpush1.bf16.msra.mxu0 %v282
      %318 = vmatprep.subr.bf16.mxu0 0
      %319 = vmatpush1.bf16.msra.mxu0 %v283
      %320 = vmatprep.subr.bf16.mxu0 0
      %321 = vmatpush1.bf16.msra.mxu0 %v284
      %322 = vmatprep.subr.bf16.mxu0 0
      %323 = vmatpush1.bf16.msra.mxu0 %v285
      %324 = vmatprep.subr.bf16.mxu0 0
      %325 = vmatpush1.bf16.msra.mxu0 %v286
      %326 = vmatprep.subr.bf16.mxu0 0
      %327 = vmatpush1.bf16.msra.mxu0 %v287
      %328 = vmatprep.subr.bf16.mxu0 0
      %329 = vmatpush1.bf16.msra.mxu0 %v288
      %330 = vmatprep.subr.bf16.mxu0 0
      %331 = vmatpush1.bf16.msra.mxu0 %v289
      %332 = vmatprep.subr.bf16.mxu0 0
      %333 = vmatpush1.bf16.msra.mxu0 %v290
      %334 = vmatprep.subr.bf16.mxu0 0
      %335 = vmatpush1.bf16.msra.mxu0 %v291
      %336 = vmatprep.subr.bf16.mxu0 0
      %337 = vmatpush1.bf16.msra.mxu0 %v292
      %338 = vmatprep.subr.bf16.mxu0 0
      %339 = vmatpush1.bf16.msra.mxu0 %v293
      %340 = vmatprep.subr.bf16.mxu0 0
      %341 = vmatpush1.bf16.msra.mxu0 %v294
      %342 = vmatprep.subr.bf16.mxu0 0
      %343 = vmatpush1.bf16.msra.mxu0 %v295
      %344 = vmatprep.mubr.bf16.mxu0 %v213
      %345 = vmatmul.mubr.bf16.gmra.mrb[0].mxu0 %v212
      %v346 = vpop.f32.mrb[0].mxu0
      %v347 = vadd.f32 0.0, %v346
      %v348 = vpop.f32.mrb[0].mxu0
      %v349 = vpop.f32.mrb[0].mxu0
      %v350 = vadd.f32 0.0, %v349
      %v351 = vpop.f32.mrb[0].mxu0
      %352 = vdwg.mxu0
      %v353 = vld [vmem:[%s1] sm:$0xff]
      %v354 = vld [vmem:[%s1 + $0x8] sm:$0xff]
      %v355 = vadd.f32 %v347, %v353
      %v356 = vadd.f32 %v350, %v354
      %357 = vst [vmem:[%s170] sm:$0xff] %v355
      %358 = vst [vmem:[%s170 + $0x8] sm:$0xff] %v356
      %p359 = scmp.lt.s32.totalorder %s14, 1
      %s360 = scalar_select %p359, %s14, 1
      %s361 = smul.addr %s360, 2
      %s362 = smul.addr %s361, 8
      %s363 = scalar_lea.vmem %s3, %s362
      // Predicated region
      $region33: #{patch_embedding.1} parent=31 // pred_check
        %p364 = pneg %p100
      $region34: #{patch_embedding.1} parent=31 // pred_check_branch
        %366 = sbr.rel (%p364) target = $region36
      $region35: #{patch_embedding.1} parent=31 // pred_region
        _
      $region36: #{patch_embedding.1} parent=31 // pred_fallthru
        _
    $region32: #{patch_embedding.1} parent=5 // pred_fallthru
      _
    %p367 = scmp.le.s32.totalorder 2, %s9
    // Predicated region
    $region37: #{patch_embedding.1} parent=5 // pred_check
      %p368 = pneg %p367
    $region38: #{patch_embedding.1} parent=5 // pred_check_branch
      %370 = sbr.rel (%p368) target = $region40
    $region39: #{patch_embedding.1} parent=5 // pred_region
      %s371 = ssub.s32 %s9, 2
      // Predicated region
      $region41: #{patch_embedding.1} parent=39 // pred_check
        %p372 = pneg %p106
      $region42: #{patch_embedding.1} parent=39 // pred_check_branch
        %374 = sbr.rel (%p372) target = $region44
      $region43: #{patch_embedding.1} parent=39 // pred_region
        %p375 = scmp.lt.s32.totalorder %s15, 1
        %s376 = scalar_select %p375, %s15, 1
        %s377 = smul.addr %s376, 2
        %s378 = smul.addr %s377, 8
        %s379 = scalar_lea.vmem %s3, %s378
      $region44: #{patch_embedding.1} parent=39 // pred_fallthru
        _
    $region40: #{patch_embedding.1} parent=5 // pred_fallthru
      _
  $region6: #{patch_embedding.1} parent=0 // loop_footer
    %s13 = sadd.s32 1, %s9
  $region7: #{patch_embedding.1} parent=0 // loop_footer_branch
    %8 = sbr.rel target = $region3
  $region8: #{patch_embedding.1} parent=0 // loop_exit
    _

</llo_original>
